<compile_context>
chip_gen: v7x
topology: tpu7x:2x2x1
jax: 0.10.0
libtpu: 0.0.40
codegen_flags: <defaults>
</compile_context>

<pallas_src>
import jax
import jax.numpy as jnp
from jax.experimental import pallas as pl
from jax.experimental.pallas import tpu as pltpu


# --------------------------------------------------------------------------- #
# Kernel
# --------------------------------------------------------------------------- #
def vae_decoder_kernel(x_ref, w1_ref, b1_ref, w2_ref, b2_ref, o_ref):
    # x_ref:  (TB, out_feats)      f32  (cast to bf16 in-kernel, free under MXU)
    # w1_ref: (out_feats, hid_pad) bf16   b1_ref: (1, hid_pad) f32
    # w2_ref: (hid_pad,  feat)     bf16   b2_ref: (1, feat)    f32
    # o_ref:  (TB, feat)           out_dtype
    x = x_ref[...]

    # Linear1: bf16 operands, f32 accumulation on the MXU; f32 bias + ReLU.
    h = jnp.dot(x.astype(jnp.bfloat16), w1_ref[...],
                preferred_element_type=jnp.float32)
    h = jnp.maximum(h + b1_ref[...], 0.0)

    # Linear2: cast hidden activations to bf16 for the MXU.
    y = jnp.dot(h.astype(jnp.bfloat16), w2_ref[...],
                preferred_element_type=jnp.float32)
    y = y + b2_ref[...]

    # Exact sigmoid: exp goes to the EUP slot; exact divide (negligible cost
    # here, avoids the approx-reciprocal error flagged in review).
    o_ref[...] = (1.0 / (1.0 + jnp.exp(-y))).astype(o_ref.dtype)


# --------------------------------------------------------------------------- #
# One-time parameter preparation (bf16 cast + lane-dense padding of hid)
# --------------------------------------------------------------------------- #
def prepare_decoder_params(w1_t, b1, w2_t, b2):
    """w1_t: (out_feats, hid), w2_t: (hid, feature_number); done ONCE at init."""
    out_feats, hid = w1_t.shape
    feat = w2_t.shape[1]
    hid_pad = max(128, ((hid + 127) // 128) * 128)
    if hid_pad != hid:
        # Zero padding is exact: padded hidden cols get w=0, b=0 -> ReLU(0)=0,
        # and the padded rows of w2 are 0, so they contribute nothing.
        w1_t = jnp.pad(w1_t, ((0, 0), (0, hid_pad - hid)))
        b1 = jnp.pad(b1, (0, hid_pad - hid))
        w2_t = jnp.pad(w2_t, ((0, hid_pad - hid), (0, 0)))
    w1_bf = w1_t.astype(jnp.bfloat16)
    w2_bf = w2_t.astype(jnp.bfloat16)
    b1_2d = b1.reshape(1, hid_pad).astype(jnp.float32)
    b2_2d = b2.reshape(1, feat).astype(jnp.float32)
    return w1_bf, b1_2d, w2_bf, b2_2d


# --------------------------------------------------------------------------- #
# Wrapper
# --------------------------------------------------------------------------- #
def _vmem_budget_bytes():
    """Generation-aware VMEM budget with ~20% headroom for compiler scratch."""
    try:
        cap = int(pltpu.get_tpu_info().vmem_capacity_bytes)
    except Exception:
        cap = 64 << 20  # conservative default (v7x per-core VMEM)
    return int(cap * 0.8)


def _choose_tile_b(B, x_bytes, out_feats, hid_pad, feat, out_bytes,
                   weight_bytes, budget):
    # Per-row VMEM cost: double-buffered x / o rows + in-kernel f32/bf16 temps.
    per_row = (2 * x_bytes * out_feats        # x, 2 pipeline buffers
               + 2 * out_bytes * feat         # o, 2 pipeline buffers
               + 6 * hid_pad                  # f32 hidden + bf16 copy
               + 4 * feat)                    # f32 pre-sigmoid temp
    avail = budget - weight_bytes - (4 << 20)  # fixed scratch headroom
    max_rows = max(8, avail // per_row)
    max_rows = min(int(max_rows), 4096)
    if B <= max_rows:
        return B, 1                            # whole batch in one step
    tile = max(16, (max_rows // 16) * 16)      # multi-step: 16-row alignment
    return tile, pl.cdiv(B, tile)


def vae_decoder(x, params, *, tile_b=None, out_dtype=jnp.float32):
    """x: (B, out_feats) float; params = prepare_decoder_params(...).

    out_dtype=jnp.bfloat16 halves output writeback / store-slot pressure
    (recommended on v5e) when the consumer allows it.
    """
    w1_bf, b1_2d, w2_bf, b2_2d = params
    B, out_feats = x.shape
    hid_pad = w1_bf.shape[1]
    feat = w2_bf.shape[1]
    out_bytes = jnp.dtype(out_dtype).itemsize

    # Conservative (double-buffered) weight footprint for sizing only.
    weight_bytes = 2 * ((out_feats * hid_pad + hid_pad * feat) * 2
                        + (hid_pad + feat) * 4)
    budget = _vmem_budget_bytes()

    if tile_b is None:
        tile_b, n_tiles = _choose_tile_b(B, x.dtype.itemsize, out_feats,
                                         hid_pad, feat, out_bytes,
                                         weight_bytes, budget)
    else:
        tile_b = int(tile_b)
        n_tiles = pl.cdiv(B, tile_b)

    cost = pl.CostEstimate(
        flops=2 * B * (out_feats * hid_pad + hid_pad * feat),
        transcendentals=B * feat,  # one exp per output element
        bytes_accessed=(B * out_feats * x.dtype.itemsize
                        + w1_bf.size * 2 + w2_bf.size * 2
                        + b1_2d.size * 4 + b2_2d.size * 4
                        + B * feat * out_bytes),
    )

    def build(buffered_weights):
        # Constant-index (resident) blocks: single buffer when supported.
        wk = {"pipeline_mode": pl.Buffered(1)} if buffered_weights else {}
        return pl.pallas_call(
            vae_decoder_kernel,
            out_shape=jax.ShapeDtypeStruct((B, feat), out_dtype),
            grid_spec=pltpu.PrefetchScalarGridSpec(
                num_scalar_prefetch=0,
                grid=(n_tiles,),
                in_specs=[
                    pl.BlockSpec((tile_b, out_feats), lambda i: (i, 0)),
                    pl.BlockSpec((out_feats, hid_pad), lambda i: (0, 0), **wk),
                    pl.BlockSpec((1, hid_pad), lambda i: (0, 0), **wk),
                    pl.BlockSpec((hid_pad, feat), lambda i: (0, 0), **wk),
                    pl.BlockSpec((1, feat), lambda i: (0, 0), **wk),
                ],
                out_specs=pl.BlockSpec((tile_b, feat), lambda i: (i, 0)),
            ),
            compiler_params=pltpu.CompilerParams(
                dimension_semantics=(("parallel",) if n_tiles > 1
                                     else ("arbitrary",)),
                vmem_limit_bytes=budget,
            ),
            cost_estimate=cost,
        )

    args = (x, w1_bf, b1_2d, w2_bf, b2_2d)
    try:
        out = jax.block_until_ready(build(True)(*args))
    except Exception:
        # Fallback if this JAX build rejects Buffered(1) on resident weights.
        out = build(False)(*args)
    return out


# --------------------------------------------------------------------------- #
# Reference + init
# --------------------------------------------------------------------------- #
def init_linear_params(key, in_dim, out_dim):
    """PyTorch-style nn.Linear init: U(-1/sqrt(in), 1/sqrt(in)); W transposed."""
    kw, kb = jax.random.split(key)
    bound = 1.0 / jnp.sqrt(jnp.float32(in_dim))
    w_t = jax.random.uniform(kw, (in_dim, out_dim), jnp.float32, -bound, bound)
    b = jax.random.uniform(kb, (out_dim,), jnp.float32, -bound, bound)
    return w_t, b


def vae_decoder_ref(x, w1_t, b1, w2_t, b2):
    """Pure-JAX reference mirroring the kernel's bf16 operand rounding."""
    hi = jax.lax.Precision.HIGHEST
    xb = x.astype(jnp.bfloat16).astype(jnp.float32)
    w1b = w1_t.astype(jnp.bfloat16).astype(jnp.float32)
    w2b = w2_t.astype(jnp.bfloat16).astype(jnp.float32)
    h = jnp.maximum(jnp.dot(xb, w1b, precision=hi) + b1, 0.0)
    hb = h.astype(jnp.bfloat16).astype(jnp.float32)
    return jax.nn.sigmoid(jnp.dot(hb, w2b, precision=hi) + b2)


# --------------------------------------------------------------------------- #
# Demo
# --------------------------------------------------------------------------- #
if __name__ == "__main__":
    # VAE_Decoder(feature_number, hid_feats, out_feats); forward input's last
    # dim == out_feats (the latent dim).
    feature_number = 128
    hid_feats = 64
    out_feats = 32
    batch = 32  # fits VMEM easily -> single grid step, whole batch resident

    key = jax.random.PRNGKey(0)
    k_x, k_l1, k_l2 = jax.random.split(key, 3)

    x = jax.random.normal(k_x, (batch, out_feats), jnp.float32)
    w1_t, b1 = init_linear_params(k_l1, out_feats, hid_feats)        # linear1
    w2_t, b2 = init_linear_params(k_l2, hid_feats, feature_number)   # linear2

    # One-time prep: bf16 weights + lane-dense (128) hidden padding.
    params = prepare_decoder_params(w1_t, b1, w2_t, b2)

    out = jax.block_until_ready(vae_decoder(x, params))
    ref = vae_decoder_ref(x, w1_t, b1, w2_t, b2)
    assert out.shape == (batch, feature_number)
    assert jnp.allclose(out, ref, atol=5e-3, rtol=5e-3), float(
        jnp.max(jnp.abs(out - ref)))

    # Ragged batch: no wrapper padding needed (single full-batch block).
    x_ragged = x[:19]
    out_r = jax.block_until_ready(vae_decoder(x_ragged, params))
    ref_r = vae_decoder_ref(x_ragged, w1_t, b1, w2_t, b2)
    assert out_r.shape == (19, feature_number)
    assert jnp.allclose(out_r, ref_r, atol=5e-3, rtol=5e-3)

    print("KERNEL_OK")
</pallas_src>

<mosaic_0001>
module attributes {stable_mosaic.version = 11 : i64} {
  func.func @vae_decoder_kernel(%arg0: i32, %arg1: memref<32x32xf32, #tpu.memory_space<vmem>>, %arg2: memref<32x128xbf16, #tpu.memory_space<vmem>>, %arg3: memref<1x128xf32, #tpu.memory_space<vmem>>, %arg4: memref<128x128xbf16, #tpu.memory_space<vmem>>, %arg5: memref<1x128xf32, #tpu.memory_space<vmem>>, %arg6: memref<32x128xf32, #tpu.memory_space<vmem>>) attributes {dimension_semantics = [#tpu.dimension_semantics<arbitrary>], iteration_bounds = array<i64: 1>, scalar_prefetch = 0 : i64, scratch_operands = 0 : i64, tpu.core_type = #tpu.core_type<tc>, window_params = [{transform_indices = @transform_0, window_bounds = array<i64: 32, 32>}, {pipeline_mode = #tpu.pipeline_mode<synchronous>, transform_indices = @transform_1, window_bounds = array<i64: 32, 128>}, {pipeline_mode = #tpu.pipeline_mode<synchronous>, transform_indices = @transform_2, window_bounds = array<i64: 1, 128>}, {pipeline_mode = #tpu.pipeline_mode<synchronous>, transform_indices = @transform_3, window_bounds = array<i64: 128, 128>}, {pipeline_mode = #tpu.pipeline_mode<synchronous>, transform_indices = @transform_4, window_bounds = array<i64: 1, 128>}, {transform_indices = @transform_5, window_bounds = array<i64: 32, 128>}]} {
    %c0 = arith.constant 0 : index
    %c0_0 = arith.constant 0 : index
    %0 = vector.load %arg1[%c0, %c0_0] : memref<32x32xf32, #tpu.memory_space<vmem>>, vector<32x32xf32>
    %1 = arith.truncf %0 : vector<32x32xf32> to vector<32x32xbf16>
    %c0_1 = arith.constant 0 : index
    %c0_2 = arith.constant 0 : index
    %2 = vector.load %arg2[%c0_1, %c0_2] : memref<32x128xbf16, #tpu.memory_space<vmem>>, vector<32x128xbf16>
    %cst = arith.constant dense<0.000000e+00> : vector<32x128xf32>
    %3 = tpu.matmul %1, %2, %cst {dimension_numbers = #tpu.dot_dimension_numbers<[1], [0], [0], [1], [0, 0, 1, 1], [], []>} : vector<32x32xbf16>, vector<32x128xbf16>, vector<32x128xf32> -> vector<32x128xf32>
    %c0_3 = arith.constant 0 : index
    %c0_4 = arith.constant 0 : index
    %4 = vector.load %arg3[%c0_3, %c0_4] : memref<1x128xf32, #tpu.memory_space<vmem>>, vector<1x128xf32>
    %5 = vector.broadcast %4 : vector<1x128xf32> to vector<32x128xf32>
    %6 = arith.addf %3, %5 : vector<32x128xf32>
    %cst_5 = arith.constant 0.000000e+00 : f32
    %7 = vector.broadcast %cst_5 : f32 to vector<32x128xf32>
    %8 = arith.maximumf %6, %7 : vector<32x128xf32>
    %9 = arith.truncf %8 : vector<32x128xf32> to vector<32x128xbf16>
    %c0_6 = arith.constant 0 : index
    %c0_7 = arith.constant 0 : index
    %10 = vector.load %arg4[%c0_6, %c0_7] : memref<128x128xbf16, #tpu.memory_space<vmem>>, vector<128x128xbf16>
    %cst_8 = arith.constant dense<0.000000e+00> : vector<32x128xf32>
    %11 = tpu.matmul %9, %10, %cst_8 {dimension_numbers = #tpu.dot_dimension_numbers<[1], [0], [0], [1], [0, 0, 1, 1], [], []>} : vector<32x128xbf16>, vector<128x128xbf16>, vector<32x128xf32> -> vector<32x128xf32>
    %c0_9 = arith.constant 0 : index
    %c0_10 = arith.constant 0 : index
    %12 = vector.load %arg5[%c0_9, %c0_10] : memref<1x128xf32, #tpu.memory_space<vmem>>, vector<1x128xf32>
    %13 = vector.broadcast %12 : vector<1x128xf32> to vector<32x128xf32>
    %14 = arith.addf %11, %13 : vector<32x128xf32>
    %cst_11 = arith.constant 0.000000e+00 : f32
    %15 = vector.broadcast %cst_11 : f32 to vector<32x128xf32>
    %16 = arith.subf %15, %14 : vector<32x128xf32>
    %17 = math.exp %16 : vector<32x128xf32>
    %cst_12 = arith.constant 1.000000e+00 : f32
    %18 = vector.broadcast %cst_12 : f32 to vector<32x128xf32>
    %19 = arith.addf %18, %17 : vector<32x128xf32>
    %cst_13 = arith.constant 1.000000e+00 : f32
    %20 = vector.broadcast %cst_13 : f32 to vector<32x128xf32>
    %21 = arith.divf %20, %19 : vector<32x128xf32>
    %c0_14 = arith.constant 0 : index
    %c0_15 = arith.constant 0 : index
    %22 = vector.load %arg6[%c0_14, %c0_15] : memref<32x128xf32, #tpu.memory_space<vmem>>, vector<32x128xf32>
    tpu.vector_store %arg6[%c0_14, %c0_15], %21 {strides = array<i32>} : memref<32x128xf32, #tpu.memory_space<vmem>>, vector<32x128xf32>,
    return
  }
  func.func @transform_0(%arg0: i32) -> (i32, i32) {
    %c0_i32 = arith.constant 0 : i32
    %c0_i32_0 = arith.constant 0 : i32
    return %arg0, %c0_i32 : i32, i32
  }
  func.func @transform_1(%arg0: i32) -> (i32, i32) {
    %c0_i32 = arith.constant 0 : i32
    %c0_i32_0 = arith.constant 0 : i32
    %c0_i32_1 = arith.constant 0 : i32
    return %c0_i32, %c0_i32_0 : i32, i32
  }
  func.func @transform_2(%arg0: i32) -> (i32, i32) {
    %c0_i32 = arith.constant 0 : i32
    %c0_i32_0 = arith.constant 0 : i32
    %c0_i32_1 = arith.constant 0 : i32
    return %c0_i32, %c0_i32_0 : i32, i32
  }
  func.func @transform_3(%arg0: i32) -> (i32, i32) {
    %c0_i32 = arith.constant 0 : i32
    %c0_i32_0 = arith.constant 0 : i32
    %c0_i32_1 = arith.constant 0 : i32
    return %c0_i32, %c0_i32_0 : i32, i32
  }
  func.func @transform_4(%arg0: i32) -> (i32, i32) {
    %c0_i32 = arith.constant 0 : i32
    %c0_i32_0 = arith.constant 0 : i32
    %c0_i32_1 = arith.constant 0 : i32
    return %c0_i32, %c0_i32_0 : i32, i32
  }
  func.func @transform_5(%arg0: i32) -> (i32, i32) {
    %c0_i32 = arith.constant 0 : i32
    %c0_i32_0 = arith.constant 0 : i32
    return %arg0, %c0_i32 : i32, i32
  }
}

module attributes {stable_mosaic.version = 11 : i64} {
  func.func @vae_decoder_kernel(%arg0: i32, %arg1: memref<32x32xf32, #tpu.memory_space<vmem>>, %arg2: memref<32x128xbf16, #tpu.memory_space<vmem>>, %arg3: memref<1x128xf32, #tpu.memory_space<vmem>>, %arg4: memref<128x128xbf16, #tpu.memory_space<vmem>>, %arg5: memref<1x128xf32, #tpu.memory_space<vmem>>, %arg6: memref<32x128xf32, #tpu.memory_space<vmem>>) attributes {dimension_semantics = [#tpu.dimension_semantics<arbitrary>], iteration_bounds = array<i64: 1>, scalar_prefetch = 0 : i64, scratch_operands = 0 : i64, tpu.core_type = #tpu.core_type<tc>, window_params = [{transform_indices = @transform_0, window_bounds = array<i64: 32, 32>}, {pipeline_mode = #tpu.pipeline_mode<synchronous>, transform_indices = @transform_1, window_bounds = array<i64: 32, 128>}, {pipeline_mode = #tpu.pipeline_mode<synchronous>, transform_indices = @transform_2, window_bounds = array<i64: 1, 128>}, {pipeline_mode = #tpu.pipeline_mode<synchronous>, transform_indices = @transform_3, window_bounds = array<i64: 128, 128>}, {pipeline_mode = #tpu.pipeline_mode<synchronous>, transform_indices = @transform_4, window_bounds = array<i64: 1, 128>}, {transform_indices = @transform_5, window_bounds = array<i64: 32, 128>}]} {
    %c0 = arith.constant 0 : index
    %c0_0 = arith.constant 0 : index
    %0 = vector.load %arg1[%c0, %c0_0] : memref<32x32xf32, #tpu.memory_space<vmem>>, vector<32x32xf32>
    %1 = arith.truncf %0 : vector<32x32xf32> to vector<32x32xbf16>
    %c0_1 = arith.constant 0 : index
    %c0_2 = arith.constant 0 : index
    %2 = vector.load %arg2[%c0_1, %c0_2] : memref<32x128xbf16, #tpu.memory_space<vmem>>, vector<32x128xbf16>
    %cst = arith.constant dense<0.000000e+00> : vector<32x128xf32>
    %3 = tpu.matmul %1, %2, %cst {dimension_numbers = #tpu.dot_dimension_numbers<[1], [0], [0], [1], [0, 0, 1, 1], [], []>} : vector<32x32xbf16>, vector<32x128xbf16>, vector<32x128xf32> -> vector<32x128xf32>
    %c0_3 = arith.constant 0 : index
    %c0_4 = arith.constant 0 : index
    %4 = vector.load %arg3[%c0_3, %c0_4] : memref<1x128xf32, #tpu.memory_space<vmem>>, vector<1x128xf32>
    %5 = vector.broadcast %4 : vector<1x128xf32> to vector<32x128xf32>
    %6 = arith.addf %3, %5 : vector<32x128xf32>
    %cst_5 = arith.constant 0.000000e+00 : f32
    %7 = vector.broadcast %cst_5 : f32 to vector<32x128xf32>
    %8 = arith.maximumf %6, %7 : vector<32x128xf32>
    %9 = arith.truncf %8 : vector<32x128xf32> to vector<32x128xbf16>
    %c0_6 = arith.constant 0 : index
    %c0_7 = arith.constant 0 : index
    %10 = vector.load %arg4[%c0_6, %c0_7] : memref<128x128xbf16, #tpu.memory_space<vmem>>, vector<128x128xbf16>
    %cst_8 = arith.constant dense<0.000000e+00> : vector<32x128xf32>
    %11 = tpu.matmul %9, %10, %cst_8 {dimension_numbers = #tpu.dot_dimension_numbers<[1], [0], [0], [1], [0, 0, 1, 1], [], []>} : vector<32x128xbf16>, vector<128x128xbf16>, vector<32x128xf32> -> vector<32x128xf32>
    %c0_9 = arith.constant 0 : index
    %c0_10 = arith.constant 0 : index
    %12 = vector.load %arg5[%c0_9, %c0_10] : memref<1x128xf32, #tpu.memory_space<vmem>>, vector<1x128xf32>
    %13 = vector.broadcast %12 : vector<1x128xf32> to vector<32x128xf32>
    %14 = arith.addf %11, %13 : vector<32x128xf32>
    %cst_11 = arith.constant 0.000000e+00 : f32
    %15 = vector.broadcast %cst_11 : f32 to vector<32x128xf32>
    %16 = arith.subf %15, %14 : vector<32x128xf32>
    %17 = math.exp %16 : vector<32x128xf32>
    %cst_12 = arith.constant 1.000000e+00 : f32
    %18 = vector.broadcast %cst_12 : f32 to vector<32x128xf32>
    %19 = arith.addf %18, %17 : vector<32x128xf32>
    %cst_13 = arith.constant 1.000000e+00 : f32
    %20 = vector.broadcast %cst_13 : f32 to vector<32x128xf32>
    %21 = arith.divf %20, %19 : vector<32x128xf32>
    %c0_14 = arith.constant 0 : index
    %c0_15 = arith.constant 0 : index
    %22 = vector.load %arg6[%c0_14, %c0_15] : memref<32x128xf32, #tpu.memory_space<vmem>>, vector<32x128xf32>
    tpu.vector_store %arg6[%c0_14, %c0_15], %21 {strides = array<i32>} : memref<32x128xf32, #tpu.memory_space<vmem>>, vector<32x128xf32>,
    return
  }
  func.func @transform_0(%arg0: i32) -> (i32, i32) {
    %c0_i32 = arith.constant 0 : i32
    %c0_i32_0 = arith.constant 0 : i32
    return %arg0, %c0_i32 : i32, i32
  }
  func.func @transform_1(%arg0: i32) -> (i32, i32) {
    %c0_i32 = arith.constant 0 : i32
    %c0_i32_0 = arith.constant 0 : i32
    %c0_i32_1 = arith.constant 0 : i32
    return %c0_i32, %c0_i32_0 : i32, i32
  }
  func.func @transform_2(%arg0: i32) -> (i32, i32) {
    %c0_i32 = arith.constant 0 : i32
    %c0_i32_0 = arith.constant 0 : i32
    %c0_i32_1 = arith.constant 0 : i32
    return %c0_i32, %c0_i32_0 : i32, i32
  }
  func.func @transform_3(%arg0: i32) -> (i32, i32) {
    %c0_i32 = arith.constant 0 : i32
    %c0_i32_0 = arith.constant 0 : i32
    %c0_i32_1 = arith.constant 0 : i32
    return %c0_i32, %c0_i32_0 : i32, i32
  }
  func.func @transform_4(%arg0: i32) -> (i32, i32) {
    %c0_i32 = arith.constant 0 : i32
    %c0_i32_0 = arith.constant 0 : i32
    %c0_i32_1 = arith.constant 0 : i32
    return %c0_i32, %c0_i32_0 : i32, i32
  }
  func.func @transform_5(%arg0: i32) -> (i32, i32) {
    %c0_i32 = arith.constant 0 : i32
    %c0_i32_0 = arith.constant 0 : i32
    return %arg0, %c0_i32 : i32, i32
  }
}

</mosaic_0001>

<llo_original>
// kernel: tpu_custom_call.1
$region0: #{tpu_custom_call.1}
  #allocation0 [shape = 'u32[]', space=smem, size = 0x4, offset = 0x4, fixed_abs, tag = 'smem constant byte address 0x4 - core index']
  #allocation1 [shape = 'u32[144,128]{1,0:T(1,128)}', space=vmem, size = 0x12000, scoped, tag = 'internal scratch']
  %s0 = inlined_call_operand.hbm [shape: f32[32,32], index: 0, kind: input, shape index: {}]
  %s1 = inlined_call_operand.hbm [shape: bf16[32,128], index: 1, kind: input, shape index: {}]
  %s2 = inlined_call_operand.vmem [shape: f32[1,128], index: 2, kind: input, shape index: {}]
  %s3 = inlined_call_operand.hbm [shape: bf16[128,128], index: 3, kind: input, shape index: {}]
  %s4 = inlined_call_operand.vmem [shape: f32[1,128], index: 4, kind: input, shape index: {}]
  %s5 = inlined_call_operand.hbm [shape: f32[32,128], index: 5, kind: output, shape index: {}]
  %s6 = sld [smem:[#allocation0]]
  $region42: #{tpu_custom_call.1} parent=0
    _
  %s8 = ssub.s32 1, %s6
  %s9 = scalar_select 0, %s8, %s6
  $region1: #{tpu_custom_call.1} parent=0
    #allocation2 [shape = 'u8[16384]{0}', space=vmem, size = 0x4000, scoped, tag = 'input window, operand 0, single buffered']
    #allocation3 [shape = 's32[1]{0}', space=sflag, size = 0x4, scoped, tag = 'scoped memory for tpu_custom_call.1']
    #allocation4 [shape = 's32[1]{0}', space=sflag, size = 0x4, scoped, tag = 'scoped memory for tpu_custom_call.1']
    #allocation5 [shape = 'u8[8192]{0}', space=vmem, size = 0x2000, scoped, tag = 'input window, operand 1, single buffered']
    #allocation6 [shape = 's32[1]{0}', space=sflag, size = 0x4, scoped, tag = 'scoped memory for tpu_custom_call.1']
    #allocation7 [shape = 'u8[32768]{0}', space=vmem, size = 0x8000, scoped, tag = 'input window, operand 3, single buffered']
    #allocation8 [shape = 'u8[16384]{0}', space=vmem, size = 0x4000, scoped, tag = 'output window, operand 0, single buffered']
    %10 = vsyncpa [#allocation3], 0
    %11 = vsyncpa [#allocation6], 0
    %12 = vsyncpa [#allocation4], 0
    // Predicated region
    $region2: #{tpu_custom_call.1} parent=1 // pred_check
      _
    $region3: #{tpu_custom_call.1} parent=1 // pred_check_branch
      %14 = sbr.rel (0) target = $region5
    $region4: #{tpu_custom_call.1} parent=1 // pred_region
      %s16 = ssub.s32 512, 512
      %17 = vsyncadd [#allocation3], %s16
      %s18 = sshll.u32 [#allocation2], 4
      %s19 = int_to_ptr.vmem [resolvable:$true] %s18
      %24 = dma.hbm_to_vmem [thread:$0]  %s0, 512, %s19, [#allocation3], 128, 128, 8
    $region5: #{tpu_custom_call.1} parent=1 // pred_fallthru
      _
    // Predicated region
    $region6: #{tpu_custom_call.1} parent=1 // pred_check
      _
    $region7: #{tpu_custom_call.1} parent=1 // pred_check_branch
      %26 = sbr.rel (0) target = $region9
    $region8: #{tpu_custom_call.1} parent=1 // pred_region
      %s28 = ssub.s32 256, 256
      %29 = vsyncadd [#allocation6], %s28
      %s30 = sshll.u32 [#allocation5], 4
      %s31 = int_to_ptr.vmem [resolvable:$true] %s30
      %36 = dma.hbm_to_vmem [thread:$0]  %s1, 256, %s31, [#allocation6], 64, 64, 4
    $region9: #{tpu_custom_call.1} parent=1 // pred_fallthru
      _
    // Predicated region
    $region10: #{tpu_custom_call.1} parent=1 // pred_check
      _
    $region11: #{tpu_custom_call.1} parent=1 // pred_check_branch
      %38 = sbr.rel (0) target = $region13
    $region12: #{tpu_custom_call.1} parent=1 // pred_region
      _
    $region13: #{tpu_custom_call.1} parent=1 // pred_fallthru
      _
    // Predicated region
    $region14: #{tpu_custom_call.1} parent=1 // pred_check
      _
    $region15: #{tpu_custom_call.1} parent=1 // pred_check_branch
      %40 = sbr.rel (0) target = $region17
    $region16: #{tpu_custom_call.1} parent=1 // pred_region
      %s42 = ssub.s32 1024, 1024
      %43 = vsyncadd [#allocation6], %s42
      %s44 = sshll.u32 [#allocation7], 4
      %s45 = int_to_ptr.vmem [resolvable:$true] %s44
      %50 = dma.hbm_to_vmem [thread:$0]  %s3, 1024, %s45, [#allocation6], 64, 64, 4
    $region17: #{tpu_custom_call.1} parent=1 // pred_fallthru
      _
    // Predicated region
    $region18: #{tpu_custom_call.1} parent=1 // pred_check
      _
    $region19: #{tpu_custom_call.1} parent=1 // pred_check_branch
      %52 = sbr.rel (0) target = $region21
    $region20: #{tpu_custom_call.1} parent=1 // pred_region
      _
    $region21: #{tpu_custom_call.1} parent=1 // pred_fallthru
      _
    // Predicated region
    $region22: #{tpu_custom_call.1} parent=1 // pred_check
      _
    $region23: #{tpu_custom_call.1} parent=1 // pred_check_branch
      %54 = sbr.rel (0) target = $region25
    $region24: #{tpu_custom_call.1} parent=1 // pred_region
      %55 = dma.done [#allocation3], 512
    $region25: #{tpu_custom_call.1} parent=1 // pred_fallthru
      _
    // Predicated region
    $region26: #{tpu_custom_call.1} parent=1 // pred_check
      _
    $region27: #{tpu_custom_call.1} parent=1 // pred_check_branch
      %57 = sbr.rel (0) target = $region29
    $region28: #{tpu_custom_call.1} parent=1 // pred_region
      %58 = dma.done [#allocation6], 256
    $region29: #{tpu_custom_call.1} parent=1 // pred_fallthru
      _
    // Predicated region
    $region30: #{tpu_custom_call.1} parent=1 // pred_check
      _
    $region31: #{tpu_custom_call.1} parent=1 // pred_check_branch
      %60 = sbr.rel (0) target = $region33
    $region32: #{tpu_custom_call.1} parent=1 // pred_region
      %61 = dma.done [#allocation6], 1024
    $region33: #{tpu_custom_call.1} parent=1 // pred_fallthru
      _
    %v63 = vld [vmem:[#allocation2] sm:$0xff]
    %v64 = vld [vmem:[#allocation2 + $0x8] sm:$0xff]
    %v65 = vld [vmem:[#allocation2 + $0x10] sm:$0xff]
    %v66 = vld [vmem:[#allocation2 + $0x18] sm:$0xff]
    %v67 = vpack.c.bf16 %v64, %v63
    %v68 = vpack.c.bf16 %v66, %v65
    %v69 = vld [vmem:[#allocation5] sm:$0xf]
    %v70 = vld [vmem:[#allocation5 + $0x4] sm:$0xf]
    %v71 = vld [vmem:[#allocation5 + $0x8] sm:$0xf]
    %v72 = vld [vmem:[#allocation5 + $0xc] sm:$0xf]
    %v73 = vld [vmem:[%s2] sm:$0x1]
    %v75 = vlaneseq
    %v76 = vshrl.u32 %v75, 7
    %v77 = vsub.s32 0, %v76
    %v78 = vrot.slane %v73, %v77
    %v84 = vunpack.c.l.b16 %v69
    %v85 = vunpack.c.l.b16 %v70
    %v86 = vunpack.c.l.b16 %v71
    %v87 = vunpack.c.l.b16 %v72
    %v88 = vpack.c.b16 %v85, %v84
    %v89 = vpack.c.b16 %v87, %v86
    %vm92 = vcmask 261120
    %v94 = vsel %vm92, %v67, 0
    %v97 = vsel %vm92, %v68, 0
    %99 = vmatprep.subr.bf16.mxu0 0
    %100 = vmatpush1.bf16.msra.mxu0 %v88
    %101 = vmatprep.subr.bf16.mxu0 0
    %102 = vmatpush1.bf16.msra.mxu0 %v89
    %103 = vmatprep.subr.bf16.mxu0 0
    %104 = vmatpush1.bf16.msra.mxu0 0
    %105 = vmatprep.subr.bf16.mxu0 0
    %106 = vmatpush1.bf16.msra.mxu0 0
    %107 = vmatprep.subr.bf16.mxu0 0
    %108 = vmatpush1.bf16.msra.mxu0 0
    %109 = vmatprep.subr.bf16.mxu0 0
    %110 = vmatpush1.bf16.msra.mxu0 0
    %111 = vmatprep.subr.bf16.mxu0 0
    %112 = vmatpush1.bf16.msra.mxu0 0
    %113 = vmatprep.subr.bf16.mxu0 0
    %114 = vmatpush1.bf16.msra.mxu0 0
    %115 = vmatprep.subr.bf16.mxu0 0
    %116 = vmatpush1.bf16.msra.mxu0 0
    %117 = vmatprep.subr.bf16.mxu0 0
    %118 = vmatpush1.bf16.msra.mxu0 0
    %119 = vmatprep.subr.bf16.mxu0 0
    %120 = vmatpush1.bf16.msra.mxu0 0
    %121 = vmatprep.subr.bf16.mxu0 0
    %122 = vmatpush1.bf16.msra.mxu0 0
    %123 = vmatprep.subr.bf16.mxu0 0
    %124 = vmatpush1.bf16.msra.mxu0 0
    %125 = vmatprep.subr.bf16.mxu0 0
    %126 = vmatpush1.bf16.msra.mxu0 0
    %127 = vmatprep.subr.bf16.mxu0 0
    %128 = vmatpush1.bf16.msra.mxu0 0
    %129 = vmatprep.subr.bf16.mxu0 0
    %130 = vmatpush1.bf16.msra.mxu0 0
    %131 = vmatprep.mubr.bf16.mxu0 0
    %132 = vmatmul.mubr.bf16.gmra.mrb[0].mxu0 %v94
    %v133 = vpop.f32.mrb[0].mxu0
    %v134 = vadd.f32 %v78, %v133
    %v135 = vpop.f32.mrb[0].mxu0
    %v136 = vpop.f32.mrb[0].mxu0
    %v137 = vadd.f32 %v78, %v136
    %v138 = vpop.f32.mrb[0].mxu0
    %139 = vmatprep.mubr.bf16.mxu0 0
    %140 = vmatmul.mubr.bf16.gmra.mrb[0].mxu0 %v97
    %v141 = vpop.f32.mrb[0].mxu0
    %v142 = vadd.f32 %v78, %v141
    %v143 = vpop.f32.mrb[0].mxu0
    %v144 = vpop.f32.mrb[0].mxu0
    %v145 = vadd.f32 %v78, %v144
    %v146 = vpop.f32.mrb[0].mxu0
    %147 = vdwg.mxu0
    %v148 = vmax.f32 %v134, 0.0
    %v149 = vmax.f32 %v137, 0.0
    %v150 = vmax.f32 %v142, 0.0
    %v151 = vmax.f32 %v145, 0.0
    %v152 = vpack.c.bf16 %v149, %v148
    %v153 = vpack.c.bf16 %v151, %v150
    %v154 = vld [vmem:[#allocation7] sm:$0xf]
    %v155 = vld [vmem:[#allocation7 + $0x4] sm:$0xf]
    %v156 = vld [vmem:[#allocation7 + $0x8] sm:$0xf]
    %v157 = vld [vmem:[#allocation7 + $0xc] sm:$0xf]
    %v158 = vld [vmem:[#allocation7 + $0x10] sm:$0xf]
    %v159 = vld [vmem:[#allocation7 + $0x14] sm:$0xf]
    %v160 = vld [vmem:[#allocation7 + $0x18] sm:$0xf]
    %v161 = vld [vmem:[#allocation7 + $0x1c] sm:$0xf]
    %v162 = vld [vmem:[#allocation7 + $0x20] sm:$0xf]
    %v163 = vld [vmem:[#allocation7 + $0x24] sm:$0xf]
    %v164 = vld [vmem:[#allocation7 + $0x28] sm:$0xf]
    %v165 = vld [vmem:[#allocation7 + $0x2c] sm:$0xf]
    %v166 = vld [vmem:[#allocation7 + $0x30] sm:$0xf]
    %v167 = vld [vmem:[#allocation7 + $0x34] sm:$0xf]
    %v168 = vld [vmem:[#allocation7 + $0x38] sm:$0xf]
    %v169 = vld [vmem:[#allocation7 + $0x3c] sm:$0xf]
    %v170 = vld [vmem:[%s4] sm:$0x1]
    %v172 = vlaneseq
    %v173 = vshrl.u32 %v172, 7
    %v174 = vsub.s32 0, %v173
    %v175 = vrot.slane %v170, %v174
    %v193 = vunpack.c.l.b16 %v154
    %v194 = vunpack.c.l.b16 %v155
    %v195 = vunpack.c.l.b16 %v156
    %v196 = vunpack.c.l.b16 %v157
    %v197 = vunpack.c.l.b16 %v158
    %v198 = vunpack.c.l.b16 %v159
    %v199 = vunpack.c.l.b16 %v160
    %v200 = vunpack.c.l.b16 %v161
    %v201 = vunpack.c.l.b16 %v162
    %v202 = vunpack.c.l.b16 %v163
    %v203 = vunpack.c.l.b16 %v164
    %v204 = vunpack.c.l.b16 %v165
    %v205 = vunpack.c.l.b16 %v166
    %v206 = vunpack.c.l.b16 %v167
    %v207 = vunpack.c.l.b16 %v168
    %v208 = vunpack.c.l.b16 %v169
    %v209 = vpack.c.b16 %v194, %v193
    %v210 = vpack.c.b16 %v196, %v195
    %v211 = vpack.c.b16 %v198, %v197
    %v212 = vpack.c.b16 %v200, %v199
    %v213 = vpack.c.b16 %v202, %v201
    %v214 = vpack.c.b16 %v204, %v203
    %v215 = vpack.c.b16 %v206, %v205
    %v216 = vpack.c.b16 %v208, %v207
    %225 = vmatprep.subr.bf16.mxu0 0
    %226 = vmatpush1.bf16.msra.mxu0 %v209
    %227 = vmatprep.subr.bf16.mxu0 0
    %228 = vmatpush1.bf16.msra.mxu0 %v210
    %229 = vmatprep.subr.bf16.mxu0 0
    %230 = vmatpush1.bf16.msra.mxu0 %v211
    %231 = vmatprep.subr.bf16.mxu0 0
    %232 = vmatpush1.bf16.msra.mxu0 %v212
    %233 = vmatprep.subr.bf16.mxu0 0
    %234 = vmatpush1.bf16.msra.mxu0 %v213
    %235 = vmatprep.subr.bf16.mxu0 0
    %236 = vmatpush1.bf16.msra.mxu0 %v214
    %237 = vmatprep.subr.bf16.mxu0 0
    %238 = vmatpush1.bf16.msra.mxu0 %v215
    %239 = vmatprep.subr.bf16.mxu0 0
    %240 = vmatpush1.bf16.msra.mxu0 %v216
    %241 = vmatprep.subr.bf16.mxu0 0
    %242 = vmatpush1.bf16.msra.mxu0 0
    %243 = vmatprep.subr.bf16.mxu0 0
    %244 = vmatpush1.bf16.msra.mxu0 0
    %245 = vmatprep.subr.bf16.mxu0 0
    %246 = vmatpush1.bf16.msra.mxu0 0
    %247 = vmatprep.subr.bf16.mxu0 0
    %248 = vmatpush1.bf16.msra.mxu0 0
    %249 = vmatprep.subr.bf16.mxu0 0
    %250 = vmatpush1.bf16.msra.mxu0 0
    %251 = vmatprep.subr.bf16.mxu0 0
    %252 = vmatpush1.bf16.msra.mxu0 0
    %253 = vmatprep.subr.bf16.mxu0 0
    %254 = vmatpush1.bf16.msra.mxu0 0
    %255 = vmatprep.subr.bf16.mxu0 0
    %256 = vmatpush1.bf16.msra.mxu0 0
    %257 = vmatprep.mubr.bf16.mxu0 0
    %258 = vmatmul.mubr.bf16.gmra.mrb[0].mxu0 %v152
    %v259 = vpop.f32.mrb[0].mxu0
    %v260 = vadd.f32 %v175, %v259
    %v261 = vpop.f32.mrb[0].mxu0
    %v262 = vpop.f32.mrb[0].mxu0
    %v263 = vadd.f32 %v175, %v262
    %v264 = vpop.f32.mrb[0].mxu0
    %265 = vmatprep.mubr.bf16.mxu0 0
    %266 = vmatmul.mubr.bf16.gmra.mrb[0].mxu0 %v153
    %v267 = vpop.f32.mrb[0].mxu0
    %v268 = vadd.f32 %v175, %v267
    %v269 = vpop.f32.mrb[0].mxu0
    %v270 = vpop.f32.mrb[0].mxu0
    %v271 = vadd.f32 %v175, %v270
    %v272 = vpop.f32.mrb[0].mxu0
    %273 = vdwg.mxu0
    %v274 = vsub.f32 0.0, %v260
    %v275 = vsub.f32 0.0, %v263
    %v276 = vsub.f32 0.0, %v268
    %v277 = vsub.f32 0.0, %v271
    %v278 = vmul.f32 %v274, 1.442695
    %v279 = vpow.pop %v278
    %v280 = vmul.f32 %v275, 1.442695
    %v281 = vpow.pop %v280
    %v282 = vmul.f32 %v276, 1.442695
    %v283 = vpow.pop %v282
    %v284 = vmul.f32 %v277, 1.442695
    %v285 = vpow.pop %v284
    %v286 = vadd.f32 %v279, 1.0
    %v287 = vadd.f32 %v281, 1.0
    %v288 = vadd.f32 %v283, 1.0
    %v289 = vadd.f32 %v285, 1.0
    %v290 = vrcp.pop %v286
    %v291 = vmul.f32 1.0, %v290
    %v292 = vrcp.pop %v287
    %v293 = vmul.f32 1.0, %v292
    %v294 = vrcp.pop %v288
    %v295 = vmul.f32 1.0, %v294
    %v296 = vrcp.pop %v289
    %v297 = vmul.f32 1.0, %v296
    %298 = vst [vmem:[#allocation8] sm:$0xff] %v291
    %299 = vst [vmem:[#allocation8 + $0x8] sm:$0xff] %v293
    %300 = vst [vmem:[#allocation8 + $0x10] sm:$0xff] %v295
    %301 = vst [vmem:[#allocation8 + $0x18] sm:$0xff] %v297
    // Predicated region
    $region34: #{tpu_custom_call.1} parent=1 // pred_check
      _
    $region35: #{tpu_custom_call.1} parent=1 // pred_check_branch
      %303 = sbr.rel (0) target = $region37
    $region36: #{tpu_custom_call.1} parent=1 // pred_region
      %s305 = ssub.s32 512, 512
      %306 = vsyncadd [#allocation4], %s305
      %s307 = sshll.u32 [#allocation8], 4
      %s308 = int_to_ptr.vmem [resolvable:$true] %s307
      %313 = dma.vmem_to_hbm [thread:$0]  %s308, 512, %s5, [#allocation4], 128, 128, 8
    $region37: #{tpu_custom_call.1} parent=1 // pred_fallthru
      _
    // Predicated region
    $region38: #{tpu_custom_call.1} parent=1 // pred_check
      _
    $region39: #{tpu_custom_call.1} parent=1 // pred_check_branch
      %315 = sbr.rel (0) target = $region41
    $region40: #{tpu_custom_call.1} parent=1 // pred_region
      %316 = dma.done [#allocation4], 512
    $region41: #{tpu_custom_call.1} parent=1 // pred_fallthru
      _
    %317 = vsyncpa [#allocation3], 1
    %318 = vsyncpa [#allocation6], 1
    %319 = vsyncpa [#allocation4], 1

// kernel: tpu_custom_call.1
$region0: #{tpu_custom_call.1}
  #allocation0 [shape = 'u32[]', space=smem, size = 0x4, offset = 0x4, fixed_abs, tag = 'smem constant byte address 0x4 - core index']
  #allocation1 [shape = 'u32[144,128]{1,0:T(1,128)}', space=vmem, size = 0x12000, scoped, tag = 'internal scratch']
  %s0 = inlined_call_operand.hbm [shape: f32[32,32], index: 0, kind: input, shape index: {}]
  %s1 = inlined_call_operand.hbm [shape: bf16[32,128], index: 1, kind: input, shape index: {}]
  %s2 = inlined_call_operand.vmem [shape: f32[1,128], index: 2, kind: input, shape index: {}]
  %s3 = inlined_call_operand.hbm [shape: bf16[128,128], index: 3, kind: input, shape index: {}]
  %s4 = inlined_call_operand.vmem [shape: f32[1,128], index: 4, kind: input, shape index: {}]
  %s5 = inlined_call_operand.hbm [shape: f32[32,128], index: 5, kind: output, shape index: {}]
  %s6 = sld [smem:[#allocation0]]
  $region42: #{tpu_custom_call.1} parent=0
    _
  %s8 = ssub.s32 1, %s6
  %s9 = scalar_select 0, %s8, %s6
  $region1: #{tpu_custom_call.1} parent=0
    #allocation2 [shape = 'u8[16384]{0}', space=vmem, size = 0x4000, scoped, tag = 'input window, operand 0, single buffered']
    #allocation3 [shape = 's32[1]{0}', space=sflag, size = 0x4, scoped, tag = 'scoped memory for tpu_custom_call.1']
    #allocation4 [shape = 's32[1]{0}', space=sflag, size = 0x4, scoped, tag = 'scoped memory for tpu_custom_call.1']
    #allocation5 [shape = 'u8[8192]{0}', space=vmem, size = 0x2000, scoped, tag = 'input window, operand 1, single buffered']
    #allocation6 [shape = 's32[1]{0}', space=sflag, size = 0x4, scoped, tag = 'scoped memory for tpu_custom_call.1']
    #allocation7 [shape = 'u8[32768]{0}', space=vmem, size = 0x8000, scoped, tag = 'input window, operand 3, single buffered']
    #allocation8 [shape = 'u8[16384]{0}', space=vmem, size = 0x4000, scoped, tag = 'output window, operand 0, single buffered']
    %10 = vsyncpa [#allocation3], 0
    %11 = vsyncpa [#allocation6], 0
    %12 = vsyncpa [#allocation4], 0
    // Predicated region
    $region2: #{tpu_custom_call.1} parent=1 // pred_check
      _
    $region3: #{tpu_custom_call.1} parent=1 // pred_check_branch
      %14 = sbr.rel (0) target = $region5
    $region4: #{tpu_custom_call.1} parent=1 // pred_region
      %s16 = ssub.s32 512, 512
      %17 = vsyncadd [#allocation3], %s16
      %s18 = sshll.u32 [#allocation2], 4
      %s19 = int_to_ptr.vmem [resolvable:$true] %s18
      %24 = dma.hbm_to_vmem [thread:$0]  %s0, 512, %s19, [#allocation3], 128, 128, 8
    $region5: #{tpu_custom_call.1} parent=1 // pred_fallthru
      _
    // Predicated region
    $region6: #{tpu_custom_call.1} parent=1 // pred_check
      _
    $region7: #{tpu_custom_call.1} parent=1 // pred_check_branch
      %26 = sbr.rel (0) target = $region9
    $region8: #{tpu_custom_call.1} parent=1 // pred_region
      %s28 = ssub.s32 256, 256
      %29 = vsyncadd [#allocation6], %s28
      %s30 = sshll.u32 [#allocation5], 4
      %s31 = int_to_ptr.vmem [resolvable:$true] %s30
      %36 = dma.hbm_to_vmem [thread:$0]  %s1, 256, %s31, [#allocation6], 64, 64, 4
    $region9: #{tpu_custom_call.1} parent=1 // pred_fallthru
      _
    // Predicated region
    $region10: #{tpu_custom_call.1} parent=1 // pred_check
      _
    $region11: #{tpu_custom_call.1} parent=1 // pred_check_branch
      %38 = sbr.rel (0) target = $region13
    $region12: #{tpu_custom_call.1} parent=1 // pred_region
      _
    $region13: #{tpu_custom_call.1} parent=1 // pred_fallthru
      _
    // Predicated region
    $region14: #{tpu_custom_call.1} parent=1 // pred_check
      _
    $region15: #{tpu_custom_call.1} parent=1 // pred_check_branch
      %40 = sbr.rel (0) target = $region17
    $region16: #{tpu_custom_call.1} parent=1 // pred_region
      %s42 = ssub.s32 1024, 1024
      %43 = vsyncadd [#allocation6], %s42
      %s44 = sshll.u32 [#allocation7], 4
      %s45 = int_to_ptr.vmem [resolvable:$true] %s44
      %50 = dma.hbm_to_vmem [thread:$0]  %s3, 1024, %s45, [#allocation6], 64, 64, 4
    $region17: #{tpu_custom_call.1} parent=1 // pred_fallthru
      _
    // Predicated region
    $region18: #{tpu_custom_call.1} parent=1 // pred_check
      _
    $region19: #{tpu_custom_call.1} parent=1 // pred_check_branch
      %52 = sbr.rel (0) target = $region21
    $region20: #{tpu_custom_call.1} parent=1 // pred_region
      _
    $region21: #{tpu_custom_call.1} parent=1 // pred_fallthru
      _
    // Predicated region
    $region22: #{tpu_custom_call.1} parent=1 // pred_check
      _
    $region23: #{tpu_custom_call.1} parent=1 // pred_check_branch
      %54 = sbr.rel (0) target = $region25
    $region24: #{tpu_custom_call.1} parent=1 // pred_region
      %55 = dma.done [#allocation3], 512
    $region25: #{tpu_custom_call.1} parent=1 // pred_fallthru
      _
    // Predicated region
    $region26: #{tpu_custom_call.1} parent=1 // pred_check
      _
    $region27: #{tpu_custom_call.1} parent=1 // pred_check_branch
      %57 = sbr.rel (0) target = $region29
    $region28: #{tpu_custom_call.1} parent=1 // pred_region
      %58 = dma.done [#allocation6], 256
    $region29: #{tpu_custom_call.1} parent=1 // pred_fallthru
      _
    // Predicated region
    $region30: #{tpu_custom_call.1} parent=1 // pred_check
      _
    $region31: #{tpu_custom_call.1} parent=1 // pred_check_branch
      %60 = sbr.rel (0) target = $region33
    $region32: #{tpu_custom_call.1} parent=1 // pred_region
      %61 = dma.done [#allocation6], 1024
    $region33: #{tpu_custom_call.1} parent=1 // pred_fallthru
      _
    %v63 = vld [vmem:[#allocation2] sm:$0xff]
    %v64 = vld [vmem:[#allocation2 + $0x8] sm:$0xff]
    %v65 = vld [vmem:[#allocation2 + $0x10] sm:$0xff]
    %v66 = vld [vmem:[#allocation2 + $0x18] sm:$0xff]
    %v67 = vpack.c.bf16 %v64, %v63
    %v68 = vpack.c.bf16 %v66, %v65
    %v69 = vld [vmem:[#allocation5] sm:$0xf]
    %v70 = vld [vmem:[#allocation5 + $0x4] sm:$0xf]
    %v71 = vld [vmem:[#allocation5 + $0x8] sm:$0xf]
    %v72 = vld [vmem:[#allocation5 + $0xc] sm:$0xf]
    %v73 = vld [vmem:[%s2] sm:$0x1]
    %v75 = vlaneseq
    %v76 = vshrl.u32 %v75, 7
    %v77 = vsub.s32 0, %v76
    %v78 = vrot.slane %v73, %v77
    %v84 = vunpack.c.l.b16 %v69
    %v85 = vunpack.c.l.b16 %v70
    %v86 = vunpack.c.l.b16 %v71
    %v87 = vunpack.c.l.b16 %v72
    %v88 = vpack.c.b16 %v85, %v84
    %v89 = vpack.c.b16 %v87, %v86
    %vm92 = vcmask 261120
    %v94 = vsel %vm92, %v67, 0
    %v97 = vsel %vm92, %v68, 0
    %99 = vmatprep.subr.bf16.mxu0 0
    %100 = vmatpush1.bf16.msra.mxu0 %v88
    %101 = vmatprep.subr.bf16.mxu0 0
    %102 = vmatpush1.bf16.msra.mxu0 %v89
    %103 = vmatprep.subr.bf16.mxu0 0
    %104 = vmatpush1.bf16.msra.mxu0 0
    %105 = vmatprep.subr.bf16.mxu0 0
    %106 = vmatpush1.bf16.msra.mxu0 0
    %107 = vmatprep.subr.bf16.mxu0 0
    %108 = vmatpush1.bf16.msra.mxu0 0
    %109 = vmatprep.subr.bf16.mxu0 0
    %110 = vmatpush1.bf16.msra.mxu0 0
    %111 = vmatprep.subr.bf16.mxu0 0
    %112 = vmatpush1.bf16.msra.mxu0 0
    %113 = vmatprep.subr.bf16.mxu0 0
    %114 = vmatpush1.bf16.msra.mxu0 0
    %115 = vmatprep.subr.bf16.mxu0 0
    %116 = vmatpush1.bf16.msra.mxu0 0
    %117 = vmatprep.subr.bf16.mxu0 0
    %118 = vmatpush1.bf16.msra.mxu0 0
    %119 = vmatprep.subr.bf16.mxu0 0
    %120 = vmatpush1.bf16.msra.mxu0 0
    %121 = vmatprep.subr.bf16.mxu0 0
    %122 = vmatpush1.bf16.msra.mxu0 0
    %123 = vmatprep.subr.bf16.mxu0 0
    %124 = vmatpush1.bf16.msra.mxu0 0
    %125 = vmatprep.subr.bf16.mxu0 0
    %126 = vmatpush1.bf16.msra.mxu0 0
    %127 = vmatprep.subr.bf16.mxu0 0
    %128 = vmatpush1.bf16.msra.mxu0 0
    %129 = vmatprep.subr.bf16.mxu0 0
    %130 = vmatpush1.bf16.msra.mxu0 0
    %131 = vmatprep.mubr.bf16.mxu0 0
    %132 = vmatmul.mubr.bf16.gmra.mrb[0].mxu0 %v94
    %v133 = vpop.f32.mrb[0].mxu0
    %v134 = vadd.f32 %v78, %v133
    %v135 = vpop.f32.mrb[0].mxu0
    %v136 = vpop.f32.mrb[0].mxu0
    %v137 = vadd.f32 %v78, %v136
    %v138 = vpop.f32.mrb[0].mxu0
    %139 = vmatprep.mubr.bf16.mxu0 0
    %140 = vmatmul.mubr.bf16.gmra.mrb[0].mxu0 %v97
    %v141 = vpop.f32.mrb[0].mxu0
    %v142 = vadd.f32 %v78, %v141
    %v143 = vpop.f32.mrb[0].mxu0
    %v144 = vpop.f32.mrb[0].mxu0
    %v145 = vadd.f32 %v78, %v144
    %v146 = vpop.f32.mrb[0].mxu0
    %147 = vdwg.mxu0
    %v148 = vmax.f32 %v134, 0.0
    %v149 = vmax.f32 %v137, 0.0
    %v150 = vmax.f32 %v142, 0.0
    %v151 = vmax.f32 %v145, 0.0
    %v152 = vpack.c.bf16 %v149, %v148
    %v153 = vpack.c.bf16 %v151, %v150
    %v154 = vld [vmem:[#allocation7] sm:$0xf]
    %v155 = vld [vmem:[#allocation7 + $0x4] sm:$0xf]
    %v156 = vld [vmem:[#allocation7 + $0x8] sm:$0xf]
    %v157 = vld [vmem:[#allocation7 + $0xc] sm:$0xf]
    %v158 = vld [vmem:[#allocation7 + $0x10] sm:$0xf]
    %v159 = vld [vmem:[#allocation7 + $0x14] sm:$0xf]
    %v160 = vld [vmem:[#allocation7 + $0x18] sm:$0xf]
    %v161 = vld [vmem:[#allocation7 + $0x1c] sm:$0xf]
    %v162 = vld [vmem:[#allocation7 + $0x20] sm:$0xf]
    %v163 = vld [vmem:[#allocation7 + $0x24] sm:$0xf]
    %v164 = vld [vmem:[#allocation7 + $0x28] sm:$0xf]
    %v165 = vld [vmem:[#allocation7 + $0x2c] sm:$0xf]
    %v166 = vld [vmem:[#allocation7 + $0x30] sm:$0xf]
    %v167 = vld [vmem:[#allocation7 + $0x34] sm:$0xf]
    %v168 = vld [vmem:[#allocation7 + $0x38] sm:$0xf]
    %v169 = vld [vmem:[#allocation7 + $0x3c] sm:$0xf]
    %v170 = vld [vmem:[%s4] sm:$0x1]
    %v172 = vlaneseq
    %v173 = vshrl.u32 %v172, 7
    %v174 = vsub.s32 0, %v173
    %v175 = vrot.slane %v170, %v174
    %v193 = vunpack.c.l.b16 %v154
    %v194 = vunpack.c.l.b16 %v155
    %v195 = vunpack.c.l.b16 %v156
    %v196 = vunpack.c.l.b16 %v157
    %v197 = vunpack.c.l.b16 %v158
    %v198 = vunpack.c.l.b16 %v159
    %v199 = vunpack.c.l.b16 %v160
    %v200 = vunpack.c.l.b16 %v161
    %v201 = vunpack.c.l.b16 %v162
    %v202 = vunpack.c.l.b16 %v163
    %v203 = vunpack.c.l.b16 %v164
    %v204 = vunpack.c.l.b16 %v165
    %v205 = vunpack.c.l.b16 %v166
    %v206 = vunpack.c.l.b16 %v167
    %v207 = vunpack.c.l.b16 %v168
    %v208 = vunpack.c.l.b16 %v169
    %v209 = vpack.c.b16 %v194, %v193
    %v210 = vpack.c.b16 %v196, %v195
    %v211 = vpack.c.b16 %v198, %v197
    %v212 = vpack.c.b16 %v200, %v199
    %v213 = vpack.c.b16 %v202, %v201
    %v214 = vpack.c.b16 %v204, %v203
    %v215 = vpack.c.b16 %v206, %v205
    %v216 = vpack.c.b16 %v208, %v207
    %225 = vmatprep.subr.bf16.mxu0 0
    %226 = vmatpush1.bf16.msra.mxu0 %v209
    %227 = vmatprep.subr.bf16.mxu0 0
    %228 = vmatpush1.bf16.msra.mxu0 %v210
    %229 = vmatprep.subr.bf16.mxu0 0
    %230 = vmatpush1.bf16.msra.mxu0 %v211
    %231 = vmatprep.subr.bf16.mxu0 0
    %232 = vmatpush1.bf16.msra.mxu0 %v212
    %233 = vmatprep.subr.bf16.mxu0 0
    %234 = vmatpush1.bf16.msra.mxu0 %v213
    %235 = vmatprep.subr.bf16.mxu0 0
    %236 = vmatpush1.bf16.msra.mxu0 %v214
    %237 = vmatprep.subr.bf16.mxu0 0
    %238 = vmatpush1.bf16.msra.mxu0 %v215
    %239 = vmatprep.subr.bf16.mxu0 0
    %240 = vmatpush1.bf16.msra.mxu0 %v216
    %241 = vmatprep.subr.bf16.mxu0 0
    %242 = vmatpush1.bf16.msra.mxu0 0
    %243 = vmatprep.subr.bf16.mxu0 0
    %244 = vmatpush1.bf16.msra.mxu0 0
    %245 = vmatprep.subr.bf16.mxu0 0
    %246 = vmatpush1.bf16.msra.mxu0 0
    %247 = vmatprep.subr.bf16.mxu0 0
    %248 = vmatpush1.bf16.msra.mxu0 0
    %249 = vmatprep.subr.bf16.mxu0 0
    %250 = vmatpush1.bf16.msra.mxu0 0
    %251 = vmatprep.subr.bf16.mxu0 0
    %252 = vmatpush1.bf16.msra.mxu0 0
    %253 = vmatprep.subr.bf16.mxu0 0
    %254 = vmatpush1.bf16.msra.mxu0 0
    %255 = vmatprep.subr.bf16.mxu0 0
    %256 = vmatpush1.bf16.msra.mxu0 0
    %257 = vmatprep.mubr.bf16.mxu0 0
    %258 = vmatmul.mubr.bf16.gmra.mrb[0].mxu0 %v152
    %v259 = vpop.f32.mrb[0].mxu0
    %v260 = vadd.f32 %v175, %v259
    %v261 = vpop.f32.mrb[0].mxu0
    %v262 = vpop.f32.mrb[0].mxu0
    %v263 = vadd.f32 %v175, %v262
    %v264 = vpop.f32.mrb[0].mxu0
    %265 = vmatprep.mubr.bf16.mxu0 0
    %266 = vmatmul.mubr.bf16.gmra.mrb[0].mxu0 %v153
    %v267 = vpop.f32.mrb[0].mxu0
    %v268 = vadd.f32 %v175, %v267
    %v269 = vpop.f32.mrb[0].mxu0
    %v270 = vpop.f32.mrb[0].mxu0
    %v271 = vadd.f32 %v175, %v270
    %v272 = vpop.f32.mrb[0].mxu0
    %273 = vdwg.mxu0
    %v274 = vsub.f32 0.0, %v260
    %v275 = vsub.f32 0.0, %v263
    %v276 = vsub.f32 0.0, %v268
    %v277 = vsub.f32 0.0, %v271
    %v278 = vmul.f32 %v274, 1.442695
    %v279 = vpow.pop %v278
    %v280 = vmul.f32 %v275, 1.442695
    %v281 = vpow.pop %v280
    %v282 = vmul.f32 %v276, 1.442695
    %v283 = vpow.pop %v282
    %v284 = vmul.f32 %v277, 1.442695
    %v285 = vpow.pop %v284
    %v286 = vadd.f32 %v279, 1.0
    %v287 = vadd.f32 %v281, 1.0
    %v288 = vadd.f32 %v283, 1.0
    %v289 = vadd.f32 %v285, 1.0
    %v290 = vrcp.pop %v286
    %v291 = vmul.f32 1.0, %v290
    %v292 = vrcp.pop %v287
    %v293 = vmul.f32 1.0, %v292
    %v294 = vrcp.pop %v288
    %v295 = vmul.f32 1.0, %v294
    %v296 = vrcp.pop %v289
    %v297 = vmul.f32 1.0, %v296
    %298 = vst [vmem:[#allocation8] sm:$0xff] %v291
    %299 = vst [vmem:[#allocation8 + $0x8] sm:$0xff] %v293
    %300 = vst [vmem:[#allocation8 + $0x10] sm:$0xff] %v295
    %301 = vst [vmem:[#allocation8 + $0x18] sm:$0xff] %v297
    // Predicated region
    $region34: #{tpu_custom_call.1} parent=1 // pred_check
      _
    $region35: #{tpu_custom_call.1} parent=1 // pred_check_branch
      %303 = sbr.rel (0) target = $region37
    $region36: #{tpu_custom_call.1} parent=1 // pred_region
      %s305 = ssub.s32 512, 512
      %306 = vsyncadd [#allocation4], %s305
      %s307 = sshll.u32 [#allocation8], 4
      %s308 = int_to_ptr.vmem [resolvable:$true] %s307
      %313 = dma.vmem_to_hbm [thread:$0]  %s308, 512, %s5, [#allocation4], 128, 128, 8
    $region37: #{tpu_custom_call.1} parent=1 // pred_fallthru
      _
    // Predicated region
    $region38: #{tpu_custom_call.1} parent=1 // pred_check
      _
    $region39: #{tpu_custom_call.1} parent=1 // pred_check_branch
      %315 = sbr.rel (0) target = $region41
    $region40: #{tpu_custom_call.1} parent=1 // pred_region
      %316 = dma.done [#allocation4], 512
    $region41: #{tpu_custom_call.1} parent=1 // pred_fallthru
      _
    %317 = vsyncpa [#allocation3], 1
    %318 = vsyncpa [#allocation6], 1
    %319 = vsyncpa [#allocation4], 1

</llo_original>
